<compile_context>
chip_gen: v6e
topology: v6e:2x2x1
jax: 0.10.0
libtpu: 0.0.40
codegen_flags: <defaults>
</compile_context>

<pallas_src>
import jax
import jax.numpy as jnp
import numpy as np
from jax.experimental import pallas as pl
from jax.experimental.pallas import tpu as pltpu

BN_EPS = 1e-5
EXPANSION = 4


def _make_kernel(seq_len):
    """Kernel closure; `seq_len` (T) is needed to keep the k=3 conv's time shifts
    from bleeding across batch boundaries inside the flattened (N*T, C) slab."""

    def kernel(x_ref, w1_ref, t1_ref, w2_ref, t2_ref, w3_ref, t3_ref, o_ref):
        x = x_ref[...]                                          # (R, Cin), R = NB*T
        rows = x_ref.shape[0]
        cmid = w1_ref.shape[1]

        # ---- conv1 (1x1, BN folded into weight/shift) + ReLU : one matmul ----
        h1 = jnp.dot(x, w1_ref[...], preferred_element_type=jnp.float32) + t1_ref[...]
        h1 = jnp.maximum(h1, 0.0)                               # (R, Cmid)

        # ---- conv2 (k=3, padding=1, stride=1) as ONE matmul ----
        # Build the lane-concatenated slab [h1[t-1], h1[t], h1[t+1]]; zero the
        # shifted rows at sequence boundaries so shifts never cross batches.
        t_in_seq = jax.lax.broadcasted_iota(jnp.int32, (rows, cmid), 0) % seq_len
        zrow = jnp.zeros((1, cmid), jnp.float32)
        prev = jnp.concatenate([zrow, h1[: rows - 1, :]], axis=0)     # h1[t-1]
        nxt = jnp.concatenate([h1[1:, :], zrow], axis=0)              # h1[t+1]
        prev = jnp.where(t_in_seq == 0, 0.0, prev)
        nxt = jnp.where(t_in_seq == seq_len - 1, 0.0, nxt)
        slab = jnp.concatenate([prev, h1, nxt], axis=1)               # (R, 3*Cmid)
        h2 = jnp.dot(slab, w2_ref[...], preferred_element_type=jnp.float32) + t2_ref[...]
        h2 = jnp.maximum(h2, 0.0)                               # (R, Cmid)

        # ---- conv3 (1x1, BN folded) + identity residual + ReLU ----
        h3 = jnp.dot(h2, w3_ref[...], preferred_element_type=jnp.float32) + t3_ref[...]
        o_ref[...] = jnp.maximum(h3 + x, 0.0)                   # (R, Cout == Cin)

    return kernel


def init_params(key, in_channels, out_channels):
    """PyTorch-layout parameters: OIW conv weights (bias=False) + per-channel BN."""
    cexp = out_channels * EXPANSION
    ks = jax.random.split(key, 16)

    def normal(k, shape, scale):
        return (scale * jax.random.normal(k, shape)).astype(jnp.float32)

    p = {
        "w1": normal(ks[0], (out_channels, in_channels, 1), 0.08),   # conv1 (O, I, 1)
        "w2": normal(ks[1], (out_channels, out_channels, 3), 0.08),  # conv2 (O, I, 3)
        "w3": normal(ks[2], (cexp, out_channels, 1), 0.08),          # conv3 (O, I, 1)
    }
    for i, (tag, c) in enumerate((("1", out_channels), ("2", out_channels), ("3", cexp))):
        base = 3 + 4 * i
        p["gamma" + tag] = 1.0 + normal(ks[base], (c,), 0.05)
        p["beta" + tag] = normal(ks[base + 1], (c,), 0.05)
        p["mean" + tag] = normal(ks[base + 2], (c,), 0.05)
        p["var" + tag] = 1.0 + 0.2 * jax.random.uniform(ks[base + 3], (c,), dtype=jnp.float32)
    return p


def bottleneck1d_forward(x_nct, params, *, batch_block=None):
    """x_nct: (N, C_in, T) -- same layout as the PyTorch Conv1d input.
    Returns (N, C_in, T), matching Bottleneck1D with stride=1, downsample=None."""
    N, Cin, T = x_nct.shape
    Cmid = params["w1"].shape[0]
    Cout = params["w3"].shape[0]
    if Cout != Cin:
        raise ValueError("identity residual requires in_channels == out_channels*expansion")

    # ---- host-side prep: fold inference BatchNorm into conv weight + shift ----
    def fold(w_oiw, gamma, beta, mean, var):
        s = gamma / jnp.sqrt(var + BN_EPS)                         # (C_layer,)
        w = jnp.transpose(w_oiw, (2, 1, 0)).reshape(-1, w_oiw.shape[0])  # (K*I, O)
        return (w * s[None, :]).astype(jnp.float32), \
               ((beta - mean * s)[None, :]).astype(jnp.float32)

    w1s, t1 = fold(params["w1"], params["gamma1"], params["beta1"], params["mean1"], params["var1"])
    w2s, t2 = fold(params["w2"], params["gamma2"], params["beta2"], params["mean2"], params["var2"])
    w3s, t3 = fold(params["w3"], params["gamma3"], params["beta3"], params["mean3"], params["var3"])

    # channels-last flattened activation slab: (N*T, Cin)
    x_flat = jnp.transpose(x_nct, (0, 2, 1)).reshape(N * T, Cin).astype(jnp.float32)

    # ---- pick batch elements per grid step (amortize per-step overhead) ----
    if batch_block is None:
        bytes_per_elem = T * (2 * Cin + 4 * Cmid) * 4
        batch_block = max(1, min(N, (2 << 20) // max(bytes_per_elem, 1)))
    batch_block = int(batch_block)
    while N % batch_block != 0:
        batch_block -= 1
    if batch_block < N and (batch_block * T) % 8 != 0:
        batch_block = N            # keep the block sublane-aligned (or full extent)
    rows = batch_block * T
    grid = (N // batch_block,)

    out_flat = pl.pallas_call(
        _make_kernel(T),
        out_shape=jax.ShapeDtypeStruct((N * T, Cout), jnp.float32),
        grid_spec=pltpu.PrefetchScalarGridSpec(
            num_scalar_prefetch=0,
            grid=grid,
            in_specs=[
                pl.BlockSpec((rows, Cin), lambda b: (b, 0)),     # x slab (per batch block)
                pl.BlockSpec(w1s.shape, lambda b: (0, 0)),       # conv1 weight (BN folded)
                pl.BlockSpec(t1.shape, lambda b: (0, 0)),        # bn1 shift
                pl.BlockSpec(w2s.shape, lambda b: (0, 0)),       # conv2 weight (3*Cmid, Cmid)
                pl.BlockSpec(t2.shape, lambda b: (0, 0)),        # bn2 shift
                pl.BlockSpec(w3s.shape, lambda b: (0, 0)),       # conv3 weight
                pl.BlockSpec(t3.shape, lambda b: (0, 0)),        # bn3 shift
            ],
            out_specs=pl.BlockSpec((rows, Cout), lambda b: (b, 0)),
        ),
        compiler_params=pltpu.CompilerParams(dimension_semantics=("parallel",)),
    )(x_flat, w1s, t1, w2s, t2, w3s, t3)

    return jnp.transpose(out_flat.reshape(N, T, Cout), (0, 2, 1))   # back to (N, C, T)


def _ref_forward(x_nct, params):
    """Pure-JAX reference (inference-mode BN), structurally different code path."""
    x = jnp.transpose(x_nct, (0, 2, 1)).astype(jnp.float32)          # (N, T, C)

    def bn(h, tag):
        s = params["gamma" + tag] / jnp.sqrt(params["var" + tag] + BN_EPS)
        sh = params["beta" + tag] - params["mean" + tag] * s
        return h * s[None, None, :] + sh[None, None, :]

    def conv1x1(h, w_oiw):
        return jnp.einsum("ntc,oc->nto", h, w_oiw[:, :, 0])

    def conv3(h, w_oiw):
        T = h.shape[1]
        hp = jnp.pad(h, ((0, 0), (1, 1), (0, 0)))
        return sum(jnp.einsum("ntc,oc->nto", hp[:, k:k + T, :], w_oiw[:, :, k])
                   for k in range(3))

    h = jnp.maximum(bn(conv1x1(x, params["w1"]), "1"), 0.0)
    h = jnp.maximum(bn(conv3(h, params["w2"]), "2"), 0.0)
    h = bn(conv1x1(h, params["w3"]), "3")
    out = jnp.maximum(h + x, 0.0)
    return jnp.transpose(out, (0, 2, 1))


if __name__ == "__main__":
    key = jax.random.PRNGKey(0)
    kx, kp = jax.random.split(key)

    N, out_channels, T = 2, 32, 16
    in_channels = out_channels * EXPANSION          # 128 -> lane-dense in/out, identity residual
    frame_feat = jax.random.normal(kx, (N, in_channels, T), dtype=jnp.float32)
    params = init_params(kp, in_channels, out_channels)

    out = bottleneck1d_forward(frame_feat, params)
    jax.block_until_ready(out)

    ref = _ref_forward(frame_feat, params)
    np.testing.assert_allclose(np.asarray(out), np.asarray(ref), rtol=5e-3, atol=5e-3)
    assert out.shape == (N, in_channels, T)

    print("KERNEL_OK")
</pallas_src>

<mosaic_0001>
module attributes {stable_mosaic.version = 11 : i64} {
  func.func @kernel(%arg0: i32, %arg1: memref<32x128xf32, #tpu.memory_space<vmem>>, %arg2: memref<128x32xf32, #tpu.memory_space<vmem>>, %arg3: memref<1x32xf32, #tpu.memory_space<vmem>>, %arg4: memref<96x32xf32, #tpu.memory_space<vmem>>, %arg5: memref<1x32xf32, #tpu.memory_space<vmem>>, %arg6: memref<32x128xf32, #tpu.memory_space<vmem>>, %arg7: memref<1x128xf32, #tpu.memory_space<vmem>>, %arg8: memref<32x128xf32, #tpu.memory_space<vmem>>) attributes {dimension_semantics = [#tpu.dimension_semantics<parallel>], iteration_bounds = array<i64: 1>, scalar_prefetch = 0 : i64, scratch_operands = 0 : i64, tpu.core_type = #tpu.core_type<tc>, window_params = [{transform_indices = @transform_0, window_bounds = array<i64: 32, 128>}, {pipeline_mode = #tpu.pipeline_mode<synchronous>, transform_indices = @transform_1, window_bounds = array<i64: 128, 32>}, {pipeline_mode = #tpu.pipeline_mode<synchronous>, transform_indices = @transform_2, window_bounds = array<i64: 1, 32>}, {pipeline_mode = #tpu.pipeline_mode<synchronous>, transform_indices = @transform_3, window_bounds = array<i64: 96, 32>}, {pipeline_mode = #tpu.pipeline_mode<synchronous>, transform_indices = @transform_4, window_bounds = array<i64: 1, 32>}, {pipeline_mode = #tpu.pipeline_mode<synchronous>, transform_indices = @transform_5, window_bounds = array<i64: 32, 128>}, {pipeline_mode = #tpu.pipeline_mode<synchronous>, transform_indices = @transform_6, window_bounds = array<i64: 1, 128>}, {transform_indices = @transform_7, window_bounds = array<i64: 32, 128>}]} {
    %c0 = arith.constant 0 : index
    %c0_0 = arith.constant 0 : index
    %0 = vector.load %arg1[%c0, %c0_0] : memref<32x128xf32, #tpu.memory_space<vmem>>, vector<32x128xf32>
    %c0_1 = arith.constant 0 : index
    %c0_2 = arith.constant 0 : index
    %1 = vector.load %arg2[%c0_1, %c0_2] : memref<128x32xf32, #tpu.memory_space<vmem>>, vector<128x32xf32>
    %cst = arith.constant dense<0.000000e+00> : vector<32x32xf32>
    %2 = tpu.matmul %0, %1, %cst {dimension_numbers = #tpu.dot_dimension_numbers<[1], [0], [0], [1], [0, 0, 1, 1], [], []>} : vector<32x128xf32>, vector<128x32xf32>, vector<32x32xf32> -> vector<32x32xf32>
    %c0_3 = arith.constant 0 : index
    %c0_4 = arith.constant 0 : index
    %3 = vector.load %arg3[%c0_3, %c0_4] : memref<1x32xf32, #tpu.memory_space<vmem>>, vector<1x32xf32>
    %4 = vector.broadcast %3 : vector<1x32xf32> to vector<32x32xf32>
    %5 = arith.addf %2, %4 : vector<32x32xf32>
    %cst_5 = arith.constant 0.000000e+00 : f32
    %6 = vector.broadcast %cst_5 : f32 to vector<32x32xf32>
    %7 = arith.maximumf %5, %6 : vector<32x32xf32>
    %8 = tpu.iota {dimensions = array<i32: 0>} : vector<32x32xi32>
    %c16_i32 = arith.constant 16 : i32
    %c0_i32 = arith.constant 0 : i32
    %9 = arith.cmpi eq, %c16_i32, %c0_i32 : i32
    %c1_i32 = arith.constant 1 : i32
    %10 = arith.select %9, %c1_i32, %c16_i32 : i32
    %11 = vector.broadcast %10 : i32 to vector<32x32xi32>
    %12 = arith.remsi %8, %11 : vector<32x32xi32>
    %c0_i32_6 = arith.constant 0 : i32
    %13 = vector.broadcast %c0_i32_6 : i32 to vector<32x32xi32>
    %14 = arith.cmpi ne, %12, %13 : vector<32x32xi32>
    %c0_i32_7 = arith.constant 0 : i32
    %15 = vector.broadcast %c0_i32_7 : i32 to vector<32x32xi32>
    %16 = arith.cmpi slt, %12, %15 : vector<32x32xi32>
    %c0_i32_8 = arith.constant 0 : i32
    %17 = arith.cmpi slt, %10, %c0_i32_8 : i32
    %18 = vector.broadcast %17 : i1 to vector<32x32xi1>
    %19 = vector.broadcast %18 : vector<32x32xi1> to vector<32x32xi1>
    %20 = arith.xori %16, %19 : vector<32x32xi1>
    %21 = arith.andi %20, %14 : vector<32x32xi1>
    %22 = vector.broadcast %10 : i32 to vector<32x32xi32>
    %23 = arith.addi %12, %22 : vector<32x32xi32>
    %24 = arith.select %21, %23, %12 : vector<32x32xi1>, vector<32x32xi32>
    %cst_9 = arith.constant 0.000000e+00 : f32
    %25 = vector.broadcast %cst_9 : f32 to vector<1x32xf32>
    %26 = vector.extract_strided_slice %7 {offsets = [0, 0], sizes = [31, 32], strides = [1, 1]} : vector<32x32xf32> to vector<31x32xf32>
    %27 = tpu.concatenate %25, %26 in 0 : vector<1x32xf32>, vector<31x32xf32> -> vector<32x32xf32>
    %28 = vector.extract_strided_slice %7 {offsets = [1, 0], sizes = [31, 32], strides = [1, 1]} : vector<32x32xf32> to vector<31x32xf32>
    %29 = tpu.concatenate %28, %25 in 0 : vector<31x32xf32>, vector<1x32xf32> -> vector<32x32xf32>
    %c0_i32_10 = arith.constant 0 : i32
    %30 = vector.broadcast %c0_i32_10 : i32 to vector<32x32xi32>
    %31 = arith.cmpi eq, %24, %30 : vector<32x32xi32>
    %cst_11 = arith.constant 0.000000e+00 : f32
    %32 = vector.broadcast %cst_11 : f32 to vector<32x32xf32>
    %33 = arith.select %31, %32, %27 : vector<32x32xi1>, vector<32x32xf32>
    %c15_i32 = arith.constant 15 : i32
    %34 = vector.broadcast %c15_i32 : i32 to vector<32x32xi32>
    %35 = arith.cmpi eq, %24, %34 : vector<32x32xi32>
    %cst_12 = arith.constant 0.000000e+00 : f32
    %36 = vector.broadcast %cst_12 : f32 to vector<32x32xf32>
    %37 = arith.select %35, %36, %29 : vector<32x32xi1>, vector<32x32xf32>
    %38 = tpu.concatenate %33, %7, %37 in 1 : vector<32x32xf32>, vector<32x32xf32>, vector<32x32xf32> -> vector<32x96xf32>
    %c0_13 = arith.constant 0 : index
    %c0_14 = arith.constant 0 : index
    %39 = vector.load %arg4[%c0_13, %c0_14] : memref<96x32xf32, #tpu.memory_space<vmem>>, vector<96x32xf32>
    %cst_15 = arith.constant dense<0.000000e+00> : vector<32x32xf32>
    %40 = tpu.matmul %38, %39, %cst_15 {dimension_numbers = #tpu.dot_dimension_numbers<[1], [0], [0], [1], [0, 0, 1, 1], [], []>} : vector<32x96xf32>, vector<96x32xf32>, vector<32x32xf32> -> vector<32x32xf32>
    %c0_16 = arith.constant 0 : index
    %c0_17 = arith.constant 0 : index
    %41 = vector.load %arg5[%c0_16, %c0_17] : memref<1x32xf32, #tpu.memory_space<vmem>>, vector<1x32xf32>
    %42 = vector.broadcast %41 : vector<1x32xf32> to vector<32x32xf32>
    %43 = arith.addf %40, %42 : vector<32x32xf32>
    %cst_18 = arith.constant 0.000000e+00 : f32
    %44 = vector.broadcast %cst_18 : f32 to vector<32x32xf32>
    %45 = arith.maximumf %43, %44 : vector<32x32xf32>
    %c0_19 = arith.constant 0 : index
    %c0_20 = arith.constant 0 : index
    %46 = vector.load %arg6[%c0_19, %c0_20] : memref<32x128xf32, #tpu.memory_space<vmem>>, vector<32x128xf32>
    %cst_21 = arith.constant dense<0.000000e+00> : vector<32x128xf32>
    %47 = tpu.matmul %45, %46, %cst_21 {dimension_numbers = #tpu.dot_dimension_numbers<[1], [0], [0], [1], [0, 0, 1, 1], [], []>} : vector<32x32xf32>, vector<32x128xf32>, vector<32x128xf32> -> vector<32x128xf32>
    %c0_22 = arith.constant 0 : index
    %c0_23 = arith.constant 0 : index
    %48 = vector.load %arg7[%c0_22, %c0_23] : memref<1x128xf32, #tpu.memory_space<vmem>>, vector<1x128xf32>
    %49 = vector.broadcast %48 : vector<1x128xf32> to vector<32x128xf32>
    %50 = arith.addf %47, %49 : vector<32x128xf32>
    %51 = arith.addf %50, %0 : vector<32x128xf32>
    %cst_24 = arith.constant 0.000000e+00 : f32
    %52 = vector.broadcast %cst_24 : f32 to vector<32x128xf32>
    %53 = arith.maximumf %51, %52 : vector<32x128xf32>
    %c0_25 = arith.constant 0 : index
    %c0_26 = arith.constant 0 : index
    %54 = vector.load %arg8[%c0_25, %c0_26] : memref<32x128xf32, #tpu.memory_space<vmem>>, vector<32x128xf32>
    tpu.vector_store %arg8[%c0_25, %c0_26], %53 {strides = array<i32>} : memref<32x128xf32, #tpu.memory_space<vmem>>, vector<32x128xf32>,
    return
  }
  func.func @transform_0(%arg0: i32) -> (i32, i32) {
    %c0_i32 = arith.constant 0 : i32
    %c0_i32_0 = arith.constant 0 : i32
    return %arg0, %c0_i32 : i32, i32
  }
  func.func @transform_1(%arg0: i32) -> (i32, i32) {
    %c0_i32 = arith.constant 0 : i32
    %c0_i32_0 = arith.constant 0 : i32
    %c0_i32_1 = arith.constant 0 : i32
    return %c0_i32, %c0_i32_0 : i32, i32
  }
  func.func @transform_2(%arg0: i32) -> (i32, i32) {
    %c0_i32 = arith.constant 0 : i32
    %c0_i32_0 = arith.constant 0 : i32
    %c0_i32_1 = arith.constant 0 : i32
    return %c0_i32, %c0_i32_0 : i32, i32
  }
  func.func @transform_3(%arg0: i32) -> (i32, i32) {
    %c0_i32 = arith.constant 0 : i32
    %c0_i32_0 = arith.constant 0 : i32
    %c0_i32_1 = arith.constant 0 : i32
    return %c0_i32, %c0_i32_0 : i32, i32
  }
  func.func @transform_4(%arg0: i32) -> (i32, i32) {
    %c0_i32 = arith.constant 0 : i32
    %c0_i32_0 = arith.constant 0 : i32
    %c0_i32_1 = arith.constant 0 : i32
    return %c0_i32, %c0_i32_0 : i32, i32
  }
  func.func @transform_5(%arg0: i32) -> (i32, i32) {
    %c0_i32 = arith.constant 0 : i32
    %c0_i32_0 = arith.constant 0 : i32
    %c0_i32_1 = arith.constant 0 : i32
    return %c0_i32, %c0_i32_0 : i32, i32
  }
  func.func @transform_6(%arg0: i32) -> (i32, i32) {
    %c0_i32 = arith.constant 0 : i32
    %c0_i32_0 = arith.constant 0 : i32
    %c0_i32_1 = arith.constant 0 : i32
    return %c0_i32, %c0_i32_0 : i32, i32
  }
  func.func @transform_7(%arg0: i32) -> (i32, i32) {
    %c0_i32 = arith.constant 0 : i32
    %c0_i32_0 = arith.constant 0 : i32
    return %arg0, %c0_i32 : i32, i32
  }
}

</mosaic_0001>

<llo_original>
// kernel: tpu_custom_call.1
$region0: #{tpu_custom_call.1}
  #allocation0 [shape = 'u32[]', space=smem, size = 0x4, offset = 0x4, fixed_abs, tag = 'smem constant byte address 0x4 - core index']
  #allocation1 [shape = 'u32[144,128]{1,0:T(1,128)}', space=vmem, size = 0x12000, scoped, tag = 'internal scratch']
  %s0 = inlined_call_operand.vmem [shape: f32[32,128], index: 0, kind: input, shape index: {}]
  %s1 = inlined_call_operand.vmem [shape: f32[128,32], index: 1, kind: input, shape index: {}]
  %s2 = inlined_call_operand.vmem [shape: f32[1,32], index: 2, kind: input, shape index: {}]
  %s3 = inlined_call_operand.vmem [shape: f32[96,32], index: 3, kind: input, shape index: {}]
  %s4 = inlined_call_operand.vmem [shape: f32[1,32], index: 4, kind: input, shape index: {}]
  %s5 = inlined_call_operand.vmem [shape: f32[32,128], index: 5, kind: input, shape index: {}]
  %s6 = inlined_call_operand.vmem [shape: f32[1,128], index: 6, kind: input, shape index: {}]
  %s7 = inlined_call_operand.hbm [shape: f32[32,128], index: 7, kind: output, shape index: {}]
  %s8 = sld [smem:[#allocation0]]
  $region38: #{tpu_custom_call.1} parent=0
    _
  %s10 = ssub.s32 1, %s8
  %s11 = scalar_select 0, %s10, %s8
  $region1: #{tpu_custom_call.1} parent=0
    #allocation2 [shape = 'u8[16384]{0}', space=vmem, size = 0x4000, scoped, tag = 'output window, operand 0, single buffered']
    #allocation3 [shape = 's32[1]{0}', space=sflag, size = 0x4, scoped, tag = 'scoped memory for tpu_custom_call.1']
    %12 = vsyncpa [#allocation3], 0
    // Predicated region
    $region2: #{tpu_custom_call.1} parent=1 // pred_check
      _
    $region3: #{tpu_custom_call.1} parent=1 // pred_check_branch
      %14 = sbr.rel (0) target = $region5
    $region4: #{tpu_custom_call.1} parent=1 // pred_region
      _
    $region5: #{tpu_custom_call.1} parent=1 // pred_fallthru
      _
    // Predicated region
    $region6: #{tpu_custom_call.1} parent=1 // pred_check
      _
    $region7: #{tpu_custom_call.1} parent=1 // pred_check_branch
      %16 = sbr.rel (0) target = $region9
    $region8: #{tpu_custom_call.1} parent=1 // pred_region
      _
    $region9: #{tpu_custom_call.1} parent=1 // pred_fallthru
      _
    // Predicated region
    $region10: #{tpu_custom_call.1} parent=1 // pred_check
      _
    $region11: #{tpu_custom_call.1} parent=1 // pred_check_branch
      %18 = sbr.rel (0) target = $region13
    $region12: #{tpu_custom_call.1} parent=1 // pred_region
      _
    $region13: #{tpu_custom_call.1} parent=1 // pred_fallthru
      _
    // Predicated region
    $region14: #{tpu_custom_call.1} parent=1 // pred_check
      _
    $region15: #{tpu_custom_call.1} parent=1 // pred_check_branch
      %20 = sbr.rel (0) target = $region17
    $region16: #{tpu_custom_call.1} parent=1 // pred_region
      _
    $region17: #{tpu_custom_call.1} parent=1 // pred_fallthru
      _
    // Predicated region
    $region18: #{tpu_custom_call.1} parent=1 // pred_check
      _
    $region19: #{tpu_custom_call.1} parent=1 // pred_check_branch
      %22 = sbr.rel (0) target = $region21
    $region20: #{tpu_custom_call.1} parent=1 // pred_region
      _
    $region21: #{tpu_custom_call.1} parent=1 // pred_fallthru
      _
    // Predicated region
    $region22: #{tpu_custom_call.1} parent=1 // pred_check
      _
    $region23: #{tpu_custom_call.1} parent=1 // pred_check_branch
      %24 = sbr.rel (0) target = $region25
    $region24: #{tpu_custom_call.1} parent=1 // pred_region
      _
    $region25: #{tpu_custom_call.1} parent=1 // pred_fallthru
      _
    // Predicated region
    $region26: #{tpu_custom_call.1} parent=1 // pred_check
      _
    $region27: #{tpu_custom_call.1} parent=1 // pred_check_branch
      %26 = sbr.rel (0) target = $region29
    $region28: #{tpu_custom_call.1} parent=1 // pred_region
      _
    $region29: #{tpu_custom_call.1} parent=1 // pred_fallthru
      _
    %v27 = vld [vmem:[%s0] sm:$0xff]
    %v28 = vld [vmem:[%s0 + $0x8] sm:$0xff]
    %v29 = vld [vmem:[%s0 + $0x10] sm:$0xff]
    %v30 = vld [vmem:[%s0 + $0x18] sm:$0xff]
    %v31 = vld [vmem:[%s1] sm:$0xff]
    %v32 = vld [vmem:[%s1 + $0x8] sm:$0xff]
    %v33 = vld [vmem:[%s1 + $0x10] sm:$0xff]
    %v34 = vld [vmem:[%s1 + $0x18] sm:$0xff]
    %v35 = vld [vmem:[%s1 + $0x20] sm:$0xff]
    %v36 = vld [vmem:[%s1 + $0x28] sm:$0xff]
    %v37 = vld [vmem:[%s1 + $0x30] sm:$0xff]
    %v38 = vld [vmem:[%s1 + $0x38] sm:$0xff]
    %v39 = vld [vmem:[%s1 + $0x40] sm:$0xff]
    %v40 = vld [vmem:[%s1 + $0x48] sm:$0xff]
    %v41 = vld [vmem:[%s1 + $0x50] sm:$0xff]
    %v42 = vld [vmem:[%s1 + $0x58] sm:$0xff]
    %v43 = vld [vmem:[%s1 + $0x60] sm:$0xff]
    %v44 = vld [vmem:[%s1 + $0x68] sm:$0xff]
    %v45 = vld [vmem:[%s1 + $0x70] sm:$0xff]
    %v46 = vld [vmem:[%s1 + $0x78] sm:$0xff]
    %v47 = vld [vmem:[%s2] sm:$0x1]
    %v49 = vlaneseq
    %v50 = vshrl.u32 %v49, 7
    %v51 = vsub.s32 0, %v50
    %v52 = vrot.slane %v47, %v51
    %54 = vmatprep.subr.mxu0 0.0
    %55 = vmatpush1.msra.mxu0 %v46
    %56 = vmatprep.subr.mxu0 0.0
    %57 = vmatpush1.msra.mxu0 %v45
    %58 = vmatprep.subr.mxu0 0.0
    %59 = vmatpush1.msra.mxu0 %v44
    %60 = vmatprep.subr.mxu0 0.0
    %61 = vmatpush1.msra.mxu0 %v43
    %62 = vmatprep.subr.mxu0 0.0
    %63 = vmatpush1.msra.mxu0 %v42
    %64 = vmatprep.subr.mxu0 0.0
    %65 = vmatpush1.msra.mxu0 %v41
    %66 = vmatprep.subr.mxu0 0.0
    %67 = vmatpush1.msra.mxu0 %v40
    %68 = vmatprep.subr.mxu0 0.0
    %69 = vmatpush1.msra.mxu0 %v39
    %70 = vmatprep.subr.mxu0 0.0
    %71 = vmatpush1.msra.mxu0 %v38
    %72 = vmatprep.subr.mxu0 0.0
    %73 = vmatpush1.msra.mxu0 %v37
    %74 = vmatprep.subr.mxu0 0.0
    %75 = vmatpush1.msra.mxu0 %v36
    %76 = vmatprep.subr.mxu0 0.0
    %77 = vmatpush1.msra.mxu0 %v35
    %78 = vmatprep.subr.mxu0 0.0
    %79 = vmatpush1.msra.mxu0 %v34
    %80 = vmatprep.subr.mxu0 0.0
    %81 = vmatpush1.msra.mxu0 %v33
    %82 = vmatprep.subr.mxu0 0.0
    %83 = vmatpush1.msra.mxu0 %v32
    %84 = vmatprep.subr.mxu0 0.0
    %85 = vmatpush1.msra.mxu0 %v31
    %86 = vmatprep.subr.mxu0 0.0
    %87 = vmatpush2.msra.mxu0 0.0
    %88 = vmatprep.subr.mxu0 0.0
    %89 = vmatpush2.msra.mxu0 0.0
    %90 = vmatprep.subr.mxu0 0.0
    %91 = vmatpush2.msra.mxu0 0.0
    %92 = vmatprep.subr.mxu0 0.0
    %93 = vmatpush2.msra.mxu0 0.0
    %94 = vmatprep.subr.mxu0 0.0
    %95 = vmatpush2.msra.mxu0 0.0
    %96 = vmatprep.subr.mxu0 0.0
    %97 = vmatpush2.msra.mxu0 0.0
    %98 = vmatprep.subr.mxu0 0.0
    %99 = vmatpush2.msra.mxu0 0.0
    %100 = vmatprep.subr.mxu0 0.0
    %101 = vmatpush2.msra.mxu0 0.0
    %102 = vmatprep.subr.mxu0 0.0
    %103 = vmatpush2.msra.mxu0 0.0
    %104 = vmatprep.subr.mxu0 0.0
    %105 = vmatpush2.msra.mxu0 0.0
    %106 = vmatprep.subr.mxu0 0.0
    %107 = vmatpush2.msra.mxu0 0.0
    %108 = vmatprep.subr.mxu0 0.0
    %109 = vmatpush2.msra.mxu0 0.0
    %110 = vmatprep.subr.mxu0 0.0
    %111 = vmatpush2.msra.mxu0 0.0
    %112 = vmatprep.subr.mxu0 0.0
    %113 = vmatpush2.msra.mxu0 0.0
    %114 = vmatprep.subr.mxu0 0.0
    %115 = vmatpush2.msra.mxu0 0.0
    %116 = vmatprep.subr.mxu0 0.0
    %117 = vmatpush2.msra.mxu0 0.0
    %118 = vmatprep.mubr.f32.mxu0 0.0
    %119 = vmatmul.mubr.f32.gmra.mxu0 %v27
    %v120 = vpop.f32.mrf.mxu0
    %v121 = vadd.f32 %v52, %v120
    %v122 = vpop.f32.mrf.mxu0
    %123 = vmatprep.mubr.f32.mxu0 0.0
    %124 = vmatmul.mubr.f32.gmra.mxu0 %v28
    %v125 = vpop.f32.mrf.mxu0
    %v126 = vadd.f32 %v52, %v125
    %v127 = vpop.f32.mrf.mxu0
    %128 = vmatprep.mubr.f32.mxu0 0.0
    %129 = vmatmul.mubr.f32.gmra.mxu0 %v29
    %v130 = vpop.f32.mrf.mxu0
    %v131 = vadd.f32 %v52, %v130
    %v132 = vpop.f32.mrf.mxu0
    %133 = vmatprep.mubr.f32.mxu0 0.0
    %134 = vmatmul.mubr.f32.gmra.mxu0 %v30
    %v135 = vpop.f32.mrf.mxu0
    %v136 = vadd.f32 %v52, %v135
    %v137 = vpop.f32.mrf.mxu0
    %138 = vdwg.mxu0
    %v139 = vmax.f32 %v121, 0.0
    %v140 = vmax.f32 %v126, 0.0
    %v141 = vmax.f32 %v131, 0.0
    %v142 = vmax.f32 %v136, 0.0
    %v143 = vlaneseq
    %v144 = vshrl.u32 %v143, 7
    %v145 = vadd.s32 %v144, 8
    %v146 = vadd.s32 %v144, 16
    %v147 = vadd.s32 %v144, 24
    %vm148 = vcmp.lt.s32.totalorder %v144, 0
    %v149 = vsub.s32 0, %v144
    %v150 = vsel %vm148, %v149, %v144
    %v151 = vshrl.u32 %v150, 4
    %v152 = vand.u32 %v150, 15
    %v153 = vsub.s32 0, %v152
    %v154 = vsel %vm148, %v153, %v152
    %vm155 = vcmp.lt.s32.totalorder %v145, 0
    %v156 = vsub.s32 0, %v145
    %v157 = vsel %vm155, %v156, %v145
    %v158 = vshrl.u32 %v157, 4
    %v159 = vand.u32 %v157, 15
    %v160 = vsub.s32 0, %v159
    %v161 = vsel %vm155, %v160, %v159
    %vm162 = vcmp.lt.s32.totalorder %v146, 0
    %v163 = vsub.s32 0, %v146
    %v164 = vsel %vm162, %v163, %v146
    %v165 = vshrl.u32 %v164, 4
    %v166 = vand.u32 %v164, 15
    %v167 = vsub.s32 0, %v166
    %v168 = vsel %vm162, %v167, %v166
    %vm169 = vcmp.lt.s32.totalorder %v147, 0
    %v170 = vsub.s32 0, %v147
    %v171 = vsel %vm169, %v170, %v147
    %v172 = vshrl.u32 %v171, 4
    %v173 = vand.u32 %v171, 15
    %v174 = vsub.s32 0, %v173
    %v175 = vsel %vm169, %v174, %v173
    %vm176 = vcmp.ne.s32.totalorder %v154, 0
    %vm177 = vcmp.ne.s32.totalorder %v161, 0
    %vm178 = vcmp.ne.s32.totalorder %v168, 0
    %vm179 = vcmp.ne.s32.totalorder %v175, 0
    %vm180 = vcmp.lt.s32.totalorder %v154, 0
    %vm181 = vcmp.lt.s32.totalorder %v161, 0
    %vm182 = vcmp.lt.s32.totalorder %v168, 0
    %vm183 = vcmp.lt.s32.totalorder %v175, 0
    %vm184 = vmand %vm180, %vm176
    %vm185 = vmand %vm181, %vm177
    %vm186 = vmand %vm182, %vm178
    %vm187 = vmand %vm183, %vm179
    %v188 = vadd.s32 %v154, 16
    %v189 = vadd.s32 %v161, 16
    %v190 = vadd.s32 %v168, 16
    %v191 = vadd.s32 %v175, 16
    %v192 = vsel %vm184, %v188, %v154
    %v193 = vsel %vm185, %v189, %v161
    %v194 = vsel %vm186, %v190, %v168
    %v195 = vsel %vm187, %v191, %v175
    %vm200 = vcmask 1040384
    %v201 = vrot.slane %v139, 7
    %v202 = vrot.slane %v140, 7
    %v203 = vsel %vm200, %v201, %v202
    %v204 = vrot.slane %v141, 7
    %v205 = vsel %vm200, %v202, %v204
    %v206 = vrot.slane %v142, 7
    %v207 = vsel %vm200, %v204, %v206
    %v212 = vsel %vm200, 0.0, %v201
    %vm213 = vcmask 1046528
    %v214 = vrot.slane %v139, 1
    %v215 = vrot.slane %v140, 1
    %v216 = vsel %vm213, %v214, %v215
    %v217 = vrot.slane %v141, 1
    %v218 = vsel %vm213, %v215, %v217
    %v219 = vrot.slane %v142, 1
    %v220 = vsel %vm213, %v217, %v219
    %v225 = vsel %vm213, %v219, 0.0
    %vm226 = vcmp.eq.s32.totalorder %v192, 0
    %vm227 = vcmp.eq.s32.totalorder %v193, 0
    %vm228 = vcmp.eq.s32.totalorder %v194, 0
    %vm229 = vcmp.eq.s32.totalorder %v195, 0
    %v230 = vsel %vm226, 0.0, %v212
    %v231 = vsel %vm227, 0.0, %v203
    %v232 = vsel %vm228, 0.0, %v205
    %v233 = vsel %vm229, 0.0, %v207
    %vm234 = vcmp.eq.s32.totalorder %v192, 15
    %vm235 = vcmp.eq.s32.totalorder %v193, 15
    %vm236 = vcmp.eq.s32.totalorder %v194, 15
    %vm237 = vcmp.eq.s32.totalorder %v195, 15
    %v238 = vsel %vm234, 0.0, %v216
    %v239 = vsel %vm235, 0.0, %v218
    %v240 = vsel %vm236, 0.0, %v220
    %v241 = vsel %vm237, 0.0, %v225
    %242 = vrot.lane.b32.xlu0 %v139, 32
    %v243 = vpop.permute.xlu0 %242
    %244 = vrot.lane.b32.xlu0 %v140, 32
    %v245 = vpop.permute.xlu0 %244
    %246 = vrot.lane.b32.xlu0 %v141, 32
    %v247 = vpop.permute.xlu0 %246
    %248 = vrot.lane.b32.xlu0 %v142, 32
    %v249 = vpop.permute.xlu0 %248
    %258 = vrot.lane.b32.xlu0 %v238, 64
    %v259 = vpop.permute.xlu0 %258
    %260 = vrot.lane.b32.xlu0 %v239, 64
    %v261 = vpop.permute.xlu0 %260
    %262 = vrot.lane.b32.xlu0 %v240, 64
    %v263 = vpop.permute.xlu0 %262
    %264 = vrot.lane.b32.xlu0 %v241, 64
    %v265 = vpop.permute.xlu0 %264
    %vm270 = vcmask 261120
    %v271 = vsel %vm270, %v230, %v243
    %v272 = vsel %vm270, %v231, %v245
    %v273 = vsel %vm270, %v232, %v247
    %v274 = vsel %vm270, %v233, %v249
    %vm275 = vcmask 523264
    %v276 = vsel %vm275, %v271, %v259
    %v277 = vsel %vm275, %v272, %v261
    %v278 = vsel %vm275, %v273, %v263
    %v279 = vsel %vm275, %v274, %v265
    %v280 = vld [vmem:[%s3] sm:$0xff]
    %v281 = vld [vmem:[%s3 + $0x8] sm:$0xff]
    %v282 = vld [vmem:[%s3 + $0x10] sm:$0xff]
    %v283 = vld [vmem:[%s3 + $0x18] sm:$0xff]
    %v284 = vld [vmem:[%s3 + $0x20] sm:$0xff]
    %v285 = vld [vmem:[%s3 + $0x28] sm:$0xff]
    %v286 = vld [vmem:[%s3 + $0x30] sm:$0xff]
    %v287 = vld [vmem:[%s3 + $0x38] sm:$0xff]
    %v288 = vld [vmem:[%s3 + $0x40] sm:$0xff]
    %v289 = vld [vmem:[%s3 + $0x48] sm:$0xff]
    %v290 = vld [vmem:[%s3 + $0x50] sm:$0xff]
    %v291 = vld [vmem:[%s3 + $0x58] sm:$0xff]
    %v292 = vld [vmem:[%s4] sm:$0x1]
    %v294 = vlaneseq
    %v295 = vshrl.u32 %v294, 7
    %v296 = vsub.s32 0, %v295
    %v297 = vrot.slane %v292, %v296
    %vm299 = vcmask 785408
    %v301 = vsel %vm299, %v276, 0
    %v304 = vsel %vm299, %v277, 0
    %v307 = vsel %vm299, %v278, 0
    %v310 = vsel %vm299, %v279, 0
    %312 = vmatprep.subr.mxu0 0.0
    %313 = vmatpush1.msra.mxu0 0.0
    %314 = vmatprep.subr.mxu0 0.0
    %315 = vmatpush1.msra.mxu0 0.0
    %316 = vmatprep.subr.mxu0 0.0
    %317 = vmatpush1.msra.mxu0 0.0
    %318 = vmatprep.subr.mxu0 0.0
    %319 = vmatpush1.msra.mxu0 0.0
    %320 = vmatprep.subr.mxu0 0.0
    %321 = vmatpush1.msra.mxu0 %v291
    %322 = vmatprep.subr.mxu0 0.0
    %323 = vmatpush1.msra.mxu0 %v290
    %324 = vmatprep.subr.mxu0 0.0
    %325 = vmatpush1.msra.mxu0 %v289
    %326 = vmatprep.subr.mxu0 0.0
    %327 = vmatpush1.msra.mxu0 %v288
    %328 = vmatprep.subr.mxu0 0.0
    %329 = vmatpush1.msra.mxu0 %v287
    %330 = vmatprep.subr.mxu0 0.0
    %331 = vmatpush1.msra.mxu0 %v286
    %332 = vmatprep.subr.mxu0 0.0
    %333 = vmatpush1.msra.mxu0 %v285
    %334 = vmatprep.subr.mxu0 0.0
    %335 = vmatpush1.msra.mxu0 %v284
    %336 = vmatprep.subr.mxu0 0.0
    %337 = vmatpush1.msra.mxu0 %v283
    %338 = vmatprep.subr.mxu0 0.0
    %339 = vmatpush1.msra.mxu0 %v282
    %340 = vmatprep.subr.mxu0 0.0
    %341 = vmatpush1.msra.mxu0 %v281
    %342 = vmatprep.subr.mxu0 0.0
    %343 = vmatpush1.msra.mxu0 %v280
    %344 = vmatprep.subr.mxu0 0.0
    %345 = vmatpush2.msra.mxu0 0.0
    %346 = vmatprep.subr.mxu0 0.0
    %347 = vmatpush2.msra.mxu0 0.0
    %348 = vmatprep.subr.mxu0 0.0
    %349 = vmatpush2.msra.mxu0 0.0
    %350 = vmatprep.subr.mxu0 0.0
    %351 = vmatpush2.msra.mxu0 0.0
    %352 = vmatprep.subr.mxu0 0.0
    %353 = vmatpush2.msra.mxu0 0.0
    %354 = vmatprep.subr.mxu0 0.0
    %355 = vmatpush2.msra.mxu0 0.0
    %356 = vmatprep.subr.mxu0 0.0
    %357 = vmatpush2.msra.mxu0 0.0
    %358 = vmatprep.subr.mxu0 0.0
    %359 = vmatpush2.msra.mxu0 0.0
    %360 = vmatprep.subr.mxu0 0.0
    %361 = vmatpush2.msra.mxu0 0.0
    %362 = vmatprep.subr.mxu0 0.0
    %363 = vmatpush2.msra.mxu0 0.0
    %364 = vmatprep.subr.mxu0 0.0
    %365 = vmatpush2.msra.mxu0 0.0
    %366 = vmatprep.subr.mxu0 0.0
    %367 = vmatpush2.msra.mxu0 0.0
    %368 = vmatprep.subr.mxu0 0.0
    %369 = vmatpush2.msra.mxu0 0.0
    %370 = vmatprep.subr.mxu0 0.0
    %371 = vmatpush2.msra.mxu0 0.0
    %372 = vmatprep.subr.mxu0 0.0
    %373 = vmatpush2.msra.mxu0 0.0
    %374 = vmatprep.subr.mxu0 0.0
    %375 = vmatpush2.msra.mxu0 0.0
    %376 = vmatprep.mubr.f32.mxu0 0.0
    %377 = vmatmul.mubr.f32.gmra.mxu0 %v301
    %v378 = vpop.f32.mrf.mxu0
    %v379 = vadd.f32 %v297, %v378
    %v380 = vpop.f32.mrf.mxu0
    %381 = vmatprep.mubr.f32.mxu0 0.0
    %382 = vmatmul.mubr.f32.gmra.mxu0 %v304
    %v383 = vpop.f32.mrf.mxu0
    %v384 = vadd.f32 %v297, %v383
    %v385 = vpop.f32.mrf.mxu0
    %386 = vmatprep.mubr.f32.mxu0 0.0
    %387 = vmatmul.mubr.f32.gmra.mxu0 %v307
    %v388 = vpop.f32.mrf.mxu0
    %v389 = vadd.f32 %v297, %v388
    %v390 = vpop.f32.mrf.mxu0
    %391 = vmatprep.mubr.f32.mxu0 0.0
    %392 = vmatmul.mubr.f32.gmra.mxu0 %v310
    %v393 = vpop.f32.mrf.mxu0
    %v394 = vadd.f32 %v297, %v393
    %v395 = vpop.f32.mrf.mxu0
    %396 = vdwg.mxu0
    %v397 = vmax.f32 %v379, 0.0
    %v398 = vmax.f32 %v384, 0.0
    %v399 = vmax.f32 %v389, 0.0
    %v400 = vmax.f32 %v394, 0.0
    %v401 = vld [vmem:[%s5] sm:$0xff]
    %v402 = vld [vmem:[%s5 + $0x8] sm:$0xff]
    %v403 = vld [vmem:[%s5 + $0x10] sm:$0xff]
    %v404 = vld [vmem:[%s5 + $0x18] sm:$0xff]
    %v405 = vld [vmem:[%s6] sm:$0x1]
    %v407 = vlaneseq
    %v408 = vshrl.u32 %v407, 7
    %v409 = vsub.s32 0, %v408
    %v410 = vrot.slane %v405, %v409
    %v413 = vsel %vm270, %v397, 0
    %v416 = vsel %vm270, %v398, 0
    %v419 = vsel %vm270, %v399, 0
    %v422 = vsel %vm270, %v400, 0
    %424 = vmatprep.subr.mxu0 0.0
    %425 = vmatpush1.msra.mxu0 0.0
    %426 = vmatprep.subr.mxu0 0.0
    %427 = vmatpush1.msra.mxu0 0.0
    %428 = vmatprep.subr.mxu0 0.0
    %429 = vmatpush1.msra.mxu0 0.0
    %430 = vmatprep.subr.mxu0 0.0
    %431 = vmatpush1.msra.mxu0 0.0
    %432 = vmatprep.subr.mxu0 0.0
    %433 = vmatpush1.msra.mxu0 0.0
    %434 = vmatprep.subr.mxu0 0.0
    %435 = vmatpush1.msra.mxu0 0.0
    %436 = vmatprep.subr.mxu0 0.0
    %437 = vmatpush1.msra.mxu0 0.0
    %438 = vmatprep.subr.mxu0 0.0
    %439 = vmatpush1.msra.mxu0 0.0
    %440 = vmatprep.subr.mxu0 0.0
    %441 = vmatpush1.msra.mxu0 0.0
    %442 = vmatprep.subr.mxu0 0.0
    %443 = vmatpush1.msra.mxu0 0.0
    %444 = vmatprep.subr.mxu0 0.0
    %445 = vmatpush1.msra.mxu0 0.0
    %446 = vmatprep.subr.mxu0 0.0
    %447 = vmatpush1.msra.mxu0 0.0
    %448 = vmatprep.subr.mxu0 0.0
    %449 = vmatpush1.msra.mxu0 %v404
    %450 = vmatprep.subr.mxu0 0.0
    %451 = vmatpush1.msra.mxu0 %v403
    %452 = vmatprep.subr.mxu0 0.0
    %453 = vmatpush1.msra.mxu0 %v402
    %454 = vmatprep.subr.mxu0 0.0
    %455 = vmatpush1.msra.mxu0 %v401
    %456 = vmatprep.subr.mxu0 0.0
    %457 = vmatpush2.msra.mxu0 0.0
    %458 = vmatprep.subr.mxu0 0.0
    %459 = vmatpush2.msra.mxu0 0.0
    %460 = vmatprep.subr.mxu0 0.0
    %461 = vmatpush2.msra.mxu0 0.0
    %462 = vmatprep.subr.mxu0 0.0
    %463 = vmatpush2.msra.mxu0 0.0
    %464 = vmatprep.subr.mxu0 0.0
    %465 = vmatpush2.msra.mxu0 0.0
    %466 = vmatprep.subr.mxu0 0.0
    %467 = vmatpush2.msra.mxu0 0.0
    %468 = vmatprep.subr.mxu0 0.0
    %469 = vmatpush2.msra.mxu0 0.0
    %470 = vmatprep.subr.mxu0 0.0
    %471 = vmatpush2.msra.mxu0 0.0
    %472 = vmatprep.subr.mxu0 0.0
    %473 = vmatpush2.msra.mxu0 0.0
    %474 = vmatprep.subr.mxu0 0.0
    %475 = vmatpush2.msra.mxu0 0.0
    %476 = vmatprep.subr.mxu0 0.0
    %477 = vmatpush2.msra.mxu0 0.0
    %478 = vmatprep.subr.mxu0 0.0
    %479 = vmatpush2.msra.mxu0 0.0
    %480 = vmatprep.subr.mxu0 0.0
    %481 = vmatpush2.msra.mxu0 0.0
    %482 = vmatprep.subr.mxu0 0.0
    %483 = vmatpush2.msra.mxu0 0.0
    %484 = vmatprep.subr.mxu0 0.0
    %485 = vmatpush2.msra.mxu0 0.0
    %486 = vmatprep.subr.mxu0 0.0
    %487 = vmatpush2.msra.mxu0 0.0
    %488 = vmatprep.mubr.f32.mxu0 0.0
    %489 = vmatmul.mubr.f32.gmra.mxu0 %v413
    %v490 = vpop.f32.mrf.mxu0
    %v491 = vadd.f32 %v410, %v490
    %v492 = vpop.f32.mrf.mxu0
    %493 = vmatprep.mubr.f32.mxu0 0.0
    %494 = vmatmul.mubr.f32.gmra.mxu0 %v416
    %v495 = vpop.f32.mrf.mxu0
    %v496 = vadd.f32 %v410, %v495
    %v497 = vpop.f32.mrf.mxu0
    %498 = vmatprep.mubr.f32.mxu0 0.0
    %499 = vmatmul.mubr.f32.gmra.mxu0 %v419
    %v500 = vpop.f32.mrf.mxu0
    %v501 = vadd.f32 %v410, %v500
    %v502 = vpop.f32.mrf.mxu0
    %503 = vmatprep.mubr.f32.mxu0 0.0
    %504 = vmatmul.mubr.f32.gmra.mxu0 %v422
    %v505 = vpop.f32.mrf.mxu0
    %v506 = vadd.f32 %v410, %v505
    %v507 = vpop.f32.mrf.mxu0
    %508 = vdwg.mxu0
    %v509 = vadd.f32 %v491, %v27
    %v510 = vadd.f32 %v496, %v28
    %v511 = vadd.f32 %v501, %v29
    %v512 = vadd.f32 %v506, %v30
    %v513 = vmax.f32 %v509, 0.0
    %v514 = vmax.f32 %v510, 0.0
    %v515 = vmax.f32 %v511, 0.0
    %v516 = vmax.f32 %v512, 0.0
    %517 = vst [vmem:[#allocation2] sm:$0xff] %v513
    %518 = vst [vmem:[#allocation2 + $0x8] sm:$0xff] %v514
    %519 = vst [vmem:[#allocation2 + $0x10] sm:$0xff] %v515
    %520 = vst [vmem:[#allocation2 + $0x18] sm:$0xff] %v516
    // Predicated region
    $region30: #{tpu_custom_call.1} parent=1 // pred_check
      _
    $region31: #{tpu_custom_call.1} parent=1 // pred_check_branch
      %522 = sbr.rel (0) target = $region33
    $region32: #{tpu_custom_call.1} parent=1 // pred_region
      %s524 = ssub.s32 512, 512
      %525 = vsyncadd [#allocation3], %s524
      %s526 = sshll.u32 [#allocation2], 4
      %s527 = int_to_ptr.vmem [resolvable:$true] %s526
      %532 = dma.vmem_to_hbm [thread:$0]  %s527, 512, %s7, [#allocation3], 128, 128, 8
    $region33: #{tpu_custom_call.1} parent=1 // pred_fallthru
      _
    // Predicated region
    $region34: #{tpu_custom_call.1} parent=1 // pred_check
      _
    $region35: #{tpu_custom_call.1} parent=1 // pred_check_branch
      %534 = sbr.rel (0) target = $region37
    $region36: #{tpu_custom_call.1} parent=1 // pred_region
      %535 = dma.done [#allocation3], 512
    $region37: #{tpu_custom_call.1} parent=1 // pred_fallthru
      _
    %536 = vsyncpa [#allocation3], 1

</llo_original>
